<compile_context>
chip_gen: v7x
topology: tpu7x:2x2x1
jax: 0.10.0
libtpu: 0.0.40
codegen_flags: <defaults>
</compile_context>

<pallas_src>
import math

import jax
import jax.numpy as jnp
from jax.experimental import pallas as pl
from jax.experimental.pallas import tpu as pltpu

SHIFT = math.log(2.0)


def _round_up(x, m):
    return ((x + m - 1) // m) * m


def _shifted_softplus(x):
    # softplus(x) - log(2): single exp + single log1p (EUP is the narrow unit).
    return jnp.maximum(x, 0.0) + jnp.log1p(jnp.exp(-jnp.abs(x))) - SHIFT


def updatev_kernel(idx_ref, v_ref, e_ref, w1_ref, b1_ref, w2_ref, b2_ref,
                   o_ref, acc_ref):
    i = pl.program_id(0)   # node tile (parallel)
    k = pl.program_id(1)   # edge tile (reduction, last grid axis)

    @pl.when(k == 0)
    def _():
        acc_ref[...] = jnp.zeros_like(acc_ref)

    te = idx_ref.shape[0]
    tn = acc_ref.shape[1]

    # Transposed one-hot (te, tn): lanes are node positions within this tile.
    # The iota is grid-invariant; the tile base is folded into the O(te)
    # index column instead (one full tn*te VPU pass saved per step).
    lane_ids = jax.lax.broadcasted_iota(jnp.int32, (te, tn), 1)
    local = idx_ref[...] - i * tn                               # (te, 1)
    onehot_t = (lane_ids == local).astype(jnp.bfloat16)        # (te, tn)

    # scatter_add(dim=0) on the MXU, transposed so tn >= 128 is the MXU
    # output-column dim:  accT(F, tn) += eT(F, te) @ onehotT(te, tn).
    # Out-of-tile / padded (-1) destinations never match and are dropped.
    acc_ref[...] += jnp.dot(e_ref[...], onehot_t,
                            preferred_element_type=jnp.float32)

    @pl.when(k == pl.num_programs(1) - 1)
    def _():
        # MLP + residual entirely in (features, nodes) space: lane-dense,
        # no in-kernel transposes.
        h = jnp.dot(w1_ref[...], acc_ref[...],
                    preferred_element_type=jnp.float32) + b1_ref[...]
        h = _shifted_softplus(h)
        h = jnp.dot(w2_ref[...], h,
                    preferred_element_type=jnp.float32) + b2_ref[...]
        o_ref[...] = v_ref[...] + h


def update_v(v, e, edge_index, w1, b1, w2, b2, *, tn=512, te=2048,
             vmem_limit_bytes=48 * 1024 * 1024):
    """Pallas implementation of UpdateV.forward.

    v:          (N, H) float32   node features
    e:          (E, F) float32   edge messages
    edge_index: (2, E) int       (row 1 = destination node index)
    w1: (F, H), b1: (H,), w2: (H, H), b2: (H,)   (weights stored for x @ W)
    tn/te: node / edge tile sizes. Defaults (512, 2048) keep all per-step
    intermediates (~1M-element one-hot/iota) well under v7x's 64 MiB VMEM;
    v6e/v5e can raise te. vmem_limit_bytes is set explicitly because the
    scoped default (16/32 MiB) is below what larger tiles need.
    """
    N, H = v.shape
    E, F = e.shape

    tn = min(tn, _round_up(N, 128))    # lane-aligned node tile
    te = min(te, _round_up(E, 128))    # lane-aligned edge tile
    # Prefer >= 2 node tiles so the "parallel" axis can shard across 2 TCs.
    if _round_up(N, tn) == tn and tn > 128:
        tn = max(128, _round_up(-(-N // 2), 128))
    n_pad = _round_up(N, tn)
    e_pad = _round_up(E, te)

    idx = edge_index[1].astype(jnp.int32)
    if e_pad != E:
        idx = jnp.pad(idx, (0, e_pad - E), constant_values=-1)  # never matches
        e = jnp.pad(e, ((0, e_pad - E), (0, 0)))
    if n_pad != N:
        v = jnp.pad(v, ((0, n_pad - N), (0, 0)))

    # HBM layouts for the kernel (see header comment).
    idx_col = idx.reshape(e_pad, 1)                 # (E, 1) int32
    e_t = e.astype(jnp.bfloat16).T                  # (F, E) bf16
    v_t = v.T                                       # (H, N) f32
    w1_k = w1.T                                     # (H, F)  for W1 @ accT
    w2_k = w2.T                                     # (H, H)
    b1_k = b1.reshape(H, 1)
    b2_k = b2.reshape(H, 1)

    grid = (n_pad // tn, e_pad // te)

    out_t = pl.pallas_call(
        updatev_kernel,
        out_shape=jax.ShapeDtypeStruct((H, n_pad), jnp.float32),
        grid=grid,
        in_specs=[
            pl.BlockSpec((te, 1), lambda i, k: (k, 0)),   # edge dst indices
            pl.BlockSpec((H, tn), lambda i, k: (0, i)),   # vT (resident over k)
            pl.BlockSpec((F, te), lambda i, k: (0, k)),   # eT (streamed over k)
            pl.BlockSpec((H, F), lambda i, k: (0, 0)),    # w1T (resident)
            pl.BlockSpec((H, 1), lambda i, k: (0, 0)),    # b1  (resident)
            pl.BlockSpec((H, H), lambda i, k: (0, 0)),    # w2T (resident)
            pl.BlockSpec((H, 1), lambda i, k: (0, 0)),    # b2  (resident)
        ],
        out_specs=pl.BlockSpec((H, tn), lambda i, k: (0, i)),
        scratch_shapes=[pltpu.VMEM((F, tn), jnp.float32)],
        compiler_params=pltpu.CompilerParams(
            dimension_semantics=("parallel", "arbitrary"),
            vmem_limit_bytes=vmem_limit_bytes),
        input_output_aliases={1: 0},   # vT (input 1) aliases the output
    )(idx_col, v_t, e_t, w1_k, b1_k, w2_k, b2_k)

    return out_t[:, :N].T


def xavier_uniform(key, fan_in, fan_out):
    # torch.nn.init.xavier_uniform_ on a (fan_out, fan_in) weight; stored
    # transposed as (fan_in, fan_out) for x @ W.
    bound = math.sqrt(6.0 / (fan_in + fan_out))
    return jax.random.uniform(key, (fan_in, fan_out), jnp.float32, -bound, bound)


def reference(v, e, edge_index, w1, b1, w2, b2):
    i = edge_index[1]
    agg = jax.ops.segment_sum(e, i, num_segments=v.shape[0])
    h = agg @ w1 + b1
    h = jax.nn.softplus(h) - SHIFT
    h = h @ w2 + b2
    return v + h


if __name__ == "__main__":
    # NOTE: the PyTorch module only typechecks when num_filters == hidden_channels
    # (scatter_add_ into zeros_like(v) followed by lin1 on that tensor).
    hidden_channels = 32
    num_filters = 32
    N = 256   # nodes
    E = 512   # edges

    key = jax.random.PRNGKey(0)
    k_v, k_e, k_idx, k_w1, k_w2 = jax.random.split(key, 5)

    v = jax.random.normal(k_v, (N, hidden_channels), jnp.float32)
    e = jax.random.normal(k_e, (E, num_filters), jnp.float32)
    dst = jax.random.randint(k_idx, (E,), 0, N, jnp.int32)
    src = jax.random.randint(jax.random.fold_in(k_idx, 1), (E,), 0, N, jnp.int32)
    edge_index = jnp.stack([src, dst], axis=0)

    w1 = xavier_uniform(k_w1, num_filters, hidden_channels)
    b1 = jnp.zeros((hidden_channels,), jnp.float32)
    w2 = xavier_uniform(k_w2, hidden_channels, hidden_channels)
    b2 = jnp.zeros((hidden_channels,), jnp.float32)

    ref = reference(v, e, edge_index, w1, b1, w2, b2)

    # Small tiles so the example exercises a real grid: (2 node tiles) x
    # (4 edge-reduction tiles). Production sizes use the larger defaults.
    out = update_v(v, e, edge_index, w1, b1, w2, b2, tn=128, te=128)
    out = jax.block_until_ready(out)

    # bf16 edge messages on the aggregation matmul (f32 accumulation) ->
    # slightly looser tolerance than a pure-f32 comparison.
    assert out.shape == ref.shape
    assert jnp.allclose(out, ref, atol=3e-2, rtol=3e-2), "mismatch vs JAX reference"

    print("KERNEL_OK")
</pallas_src>

<mosaic_0001>
module attributes {stable_mosaic.version = 11 : i64} {
  func.func @updatev_kernel(%arg0: i32, %arg1: i32, %arg2: memref<128x1xi32, #tpu.memory_space<vmem>>, %arg3: memref<32x128xf32, #tpu.memory_space<vmem>>, %arg4: memref<32x128xbf16, #tpu.memory_space<vmem>>, %arg5: memref<32x32xf32, #tpu.memory_space<vmem>>, %arg6: memref<32x1xf32, #tpu.memory_space<vmem>>, %arg7: memref<32x32xf32, #tpu.memory_space<vmem>>, %arg8: memref<32x1xf32, #tpu.memory_space<vmem>>, %arg9: memref<32x128xf32, #tpu.memory_space<vmem>>, %arg10: memref<32x128xf32, #tpu.memory_space<vmem>>) attributes {dimension_semantics = [#tpu.dimension_semantics<parallel>, #tpu.dimension_semantics<arbitrary>], iteration_bounds = array<i64: 2, 4>, scalar_prefetch = 0 : i64, scratch_operands = 1 : i64, tpu.core_type = #tpu.core_type<tc>, window_params = [{transform_indices = @transform_0, window_bounds = array<i64: 128, 1>}, {transform_indices = @transform_1, window_bounds = array<i64: 32, 128>}, {transform_indices = @transform_2, window_bounds = array<i64: 32, 128>}, {pipeline_mode = #tpu.pipeline_mode<synchronous>, transform_indices = @transform_3, window_bounds = array<i64: 32, 32>}, {pipeline_mode = #tpu.pipeline_mode<synchronous>, transform_indices = @transform_4, window_bounds = array<i64: 32, 1>}, {pipeline_mode = #tpu.pipeline_mode<synchronous>, transform_indices = @transform_5, window_bounds = array<i64: 32, 32>}, {pipeline_mode = #tpu.pipeline_mode<synchronous>, transform_indices = @transform_6, window_bounds = array<i64: 32, 1>}, {transform_indices = @transform_7, window_bounds = array<i64: 32, 128>}]} {
    %c0_i32 = arith.constant 0 : i32
    %0 = arith.cmpi eq, %arg1, %c0_i32 : i32
    %1 = arith.extui %0 : i1 to i32
    %c0_i32_0 = arith.constant 0 : i32
    %2 = arith.cmpi ne, %1, %c0_i32_0 : i32
    scf.if %2 {
      %cst_9 = arith.constant 0.000000e+00 : f32
      %21 = vector.broadcast %cst_9 : f32 to vector<32x128xf32>
      %c0_10 = arith.constant 0 : index
      %c0_11 = arith.constant 0 : index
      %22 = vector.load %arg10[%c0_10, %c0_11] : memref<32x128xf32, #tpu.memory_space<vmem>>, vector<32x128xf32>
      tpu.vector_store %arg10[%c0_10, %c0_11], %21 {strides = array<i32>} : memref<32x128xf32, #tpu.memory_space<vmem>>, vector<32x128xf32>,
    } else {
    }
    %3 = tpu.iota {dimensions = array<i32: 1>} : vector<128x128xi32>
    %c0 = arith.constant 0 : index
    %c0_1 = arith.constant 0 : index
    %4 = vector.load %arg2[%c0, %c0_1] : memref<128x1xi32, #tpu.memory_space<vmem>>, vector<128x1xi32>
    %c128_i32 = arith.constant 128 : i32
    %5 = arith.muli %arg0, %c128_i32 : i32
    %6 = vector.broadcast %5 : i32 to vector<128x1xi32>
    %7 = arith.subi %4, %6 : vector<128x1xi32>
    %8 = vector.broadcast %7 : vector<128x1xi32> to vector<128x128xi32>
    %9 = arith.cmpi eq, %3, %8 : vector<128x128xi32>
    %10 = arith.extui %9 : vector<128x128xi1> to vector<128x128xi32>
    %11 = arith.sitofp %10 : vector<128x128xi32> to vector<128x128xf32>
    %12 = arith.truncf %11 : vector<128x128xf32> to vector<128x128xbf16>
    %c0_2 = arith.constant 0 : index
    %c0_3 = arith.constant 0 : index
    %13 = vector.load %arg10[%c0_2, %c0_3] : memref<32x128xf32, #tpu.memory_space<vmem>>, vector<32x128xf32>
    %c0_4 = arith.constant 0 : index
    %c0_5 = arith.constant 0 : index
    %14 = vector.load %arg4[%c0_4, %c0_5] : memref<32x128xbf16, #tpu.memory_space<vmem>>, vector<32x128xbf16>
    %cst = arith.constant dense<0.000000e+00> : vector<32x128xf32>
    %15 = tpu.matmul %14, %12, %cst {dimension_numbers = #tpu.dot_dimension_numbers<[1], [0], [0], [1], [0, 0, 1, 1], [], []>} : vector<32x128xbf16>, vector<128x128xbf16>, vector<32x128xf32> -> vector<32x128xf32>
    %16 = arith.addf %13, %15 : vector<32x128xf32>
    %c0_6 = arith.constant 0 : index
    %c0_7 = arith.constant 0 : index
    %17 = vector.load %arg10[%c0_6, %c0_7] : memref<32x128xf32, #tpu.memory_space<vmem>>, vector<32x128xf32>
    tpu.vector_store %arg10[%c0_6, %c0_7], %16 {strides = array<i32>} : memref<32x128xf32, #tpu.memory_space<vmem>>, vector<32x128xf32>,
    %c3_i32 = arith.constant 3 : i32
    %18 = arith.cmpi eq, %arg1, %c3_i32 : i32
    %19 = arith.extui %18 : i1 to i32
    %c0_i32_8 = arith.constant 0 : i32
    %20 = arith.cmpi ne, %19, %c0_i32_8 : i32
    scf.if %20 {
      %c0_9 = arith.constant 0 : index
      %c0_10 = arith.constant 0 : index
      %21 = vector.load %arg5[%c0_9, %c0_10] : memref<32x32xf32, #tpu.memory_space<vmem>>, vector<32x32xf32>
      %c0_11 = arith.constant 0 : index
      %c0_12 = arith.constant 0 : index
      %22 = vector.load %arg10[%c0_11, %c0_12] : memref<32x128xf32, #tpu.memory_space<vmem>>, vector<32x128xf32>
      %cst_13 = arith.constant dense<0.000000e+00> : vector<32x128xf32>
      %23 = tpu.matmul %21, %22, %cst_13 {dimension_numbers = #tpu.dot_dimension_numbers<[1], [0], [0], [1], [0, 0, 1, 1], [], []>} : vector<32x32xf32>, vector<32x128xf32>, vector<32x128xf32> -> vector<32x128xf32>
      %c0_14 = arith.constant 0 : index
      %c0_15 = arith.constant 0 : index
      %24 = vector.load %arg6[%c0_14, %c0_15] : memref<32x1xf32, #tpu.memory_space<vmem>>, vector<32x1xf32>
      %25 = vector.broadcast %24 : vector<32x1xf32> to vector<32x128xf32>
      %26 = arith.addf %23, %25 : vector<32x128xf32>
      %cst_16 = arith.constant 0.000000e+00 : f32
      %27 = vector.broadcast %cst_16 : f32 to vector<32x128xf32>
      %28 = arith.maximumf %26, %27 : vector<32x128xf32>
      %29 = math.absf %26 : vector<32x128xf32>
      %cst_17 = arith.constant 0.000000e+00 : f32
      %30 = vector.broadcast %cst_17 : f32 to vector<32x128xf32>
      %31 = arith.subf %30, %29 : vector<32x128xf32>
      %32 = math.exp %31 : vector<32x128xf32>
      %33 = math.log1p %32 : vector<32x128xf32>
      %34 = arith.addf %28, %33 : vector<32x128xf32>
      %cst_18 = arith.constant 0.693147182 : f32
      %35 = vector.broadcast %cst_18 : f32 to vector<32x128xf32>
      %36 = arith.subf %34, %35 : vector<32x128xf32>
      %c0_19 = arith.constant 0 : index
      %c0_20 = arith.constant 0 : index
      %37 = vector.load %arg7[%c0_19, %c0_20] : memref<32x32xf32, #tpu.memory_space<vmem>>, vector<32x32xf32>
      %cst_21 = arith.constant dense<0.000000e+00> : vector<32x128xf32>
      %38 = tpu.matmul %37, %36, %cst_21 {dimension_numbers = #tpu.dot_dimension_numbers<[1], [0], [0], [1], [0, 0, 1, 1], [], []>} : vector<32x32xf32>, vector<32x128xf32>, vector<32x128xf32> -> vector<32x128xf32>
      %c0_22 = arith.constant 0 : index
      %c0_23 = arith.constant 0 : index
      %39 = vector.load %arg8[%c0_22, %c0_23] : memref<32x1xf32, #tpu.memory_space<vmem>>, vector<32x1xf32>
      %40 = vector.broadcast %39 : vector<32x1xf32> to vector<32x128xf32>
      %41 = arith.addf %38, %40 : vector<32x128xf32>
      %c0_24 = arith.constant 0 : index
      %c0_25 = arith.constant 0 : index
      %42 = vector.load %arg3[%c0_24, %c0_25] : memref<32x128xf32, #tpu.memory_space<vmem>>, vector<32x128xf32>
      %43 = arith.addf %42, %41 : vector<32x128xf32>
      %c0_26 = arith.constant 0 : index
      %c0_27 = arith.constant 0 : index
      %44 = vector.load %arg9[%c0_26, %c0_27] : memref<32x128xf32, #tpu.memory_space<vmem>>, vector<32x128xf32>
      tpu.vector_store %arg9[%c0_26, %c0_27], %43 {strides = array<i32>} : memref<32x128xf32, #tpu.memory_space<vmem>>, vector<32x128xf32>,
    } else {
    }
    return
  }
  func.func @transform_0(%arg0: i32, %arg1: i32) -> (i32, i32) {
    %c0_i32 = arith.constant 0 : i32
    %c0_i32_0 = arith.constant 0 : i32
    return %arg1, %c0_i32 : i32, i32
  }
  func.func @transform_1(%arg0: i32, %arg1: i32) -> (i32, i32) {
    %c0_i32 = arith.constant 0 : i32
    %c0_i32_0 = arith.constant 0 : i32
    return %c0_i32, %arg0 : i32, i32
  }
  func.func @transform_2(%arg0: i32, %arg1: i32) -> (i32, i32) {
    %c0_i32 = arith.constant 0 : i32
    %c0_i32_0 = arith.constant 0 : i32
    return %c0_i32, %arg1 : i32, i32
  }
  func.func @transform_3(%arg0: i32, %arg1: i32) -> (i32, i32) {
    %c0_i32 = arith.constant 0 : i32
    %c0_i32_0 = arith.constant 0 : i32
    %c0_i32_1 = arith.constant 0 : i32
    return %c0_i32, %c0_i32_0 : i32, i32
  }
  func.func @transform_4(%arg0: i32, %arg1: i32) -> (i32, i32) {
    %c0_i32 = arith.constant 0 : i32
    %c0_i32_0 = arith.constant 0 : i32
    %c0_i32_1 = arith.constant 0 : i32
    return %c0_i32, %c0_i32_0 : i32, i32
  }
  func.func @transform_5(%arg0: i32, %arg1: i32) -> (i32, i32) {
    %c0_i32 = arith.constant 0 : i32
    %c0_i32_0 = arith.constant 0 : i32
    %c0_i32_1 = arith.constant 0 : i32
    return %c0_i32, %c0_i32_0 : i32, i32
  }
  func.func @transform_6(%arg0: i32, %arg1: i32) -> (i32, i32) {
    %c0_i32 = arith.constant 0 : i32
    %c0_i32_0 = arith.constant 0 : i32
    %c0_i32_1 = arith.constant 0 : i32
    return %c0_i32, %c0_i32_0 : i32, i32
  }
  func.func @transform_7(%arg0: i32, %arg1: i32) -> (i32, i32) {
    %c0_i32 = arith.constant 0 : i32
    %c0_i32_0 = arith.constant 0 : i32
    return %c0_i32, %arg0 : i32, i32
  }
}

</mosaic_0001>

<llo_original>
// kernel: tpu_custom_call.1
$region0: #{tpu_custom_call.1}
  #allocation0 [shape = 'u32[]', space=smem, size = 0x4, offset = 0x4, fixed_abs, tag = 'smem constant byte address 0x4 - core index']
  #allocation1 [shape = 'u32[144,128]{1,0:T(1,128)}', space=vmem, size = 0x12000, scoped, tag = 'internal scratch']
  #allocation2 [shape = 'f32[32,128]{1,0:T(8,128)}', space=vmem, size = 0x4000, scoped, tag = 'scratch operand']
  %s0 = inlined_call_operand.vmem [shape: s32[512,1], index: 0, kind: input, shape index: {}]
  %s1 = inlined_call_operand.hbm [shape: f32[32,256], index: 1, kind: input, shape index: {}, may-alias: {1,7}]
  %s2 = inlined_call_operand.vmem [shape: bf16[32,512], index: 2, kind: input, shape index: {}]
  %s3 = inlined_call_operand.vmem [shape: f32[32,32], index: 3, kind: input, shape index: {}]
  %s4 = inlined_call_operand.vmem [shape: f32[32,1], index: 4, kind: input, shape index: {}]
  %s5 = inlined_call_operand.vmem [shape: f32[32,32], index: 5, kind: input, shape index: {}]
  %s6 = inlined_call_operand.vmem [shape: f32[32,1], index: 6, kind: input, shape index: {}]
  %s7 = inlined_call_operand.hbm [shape: f32[32,256], index: 7, kind: output, shape index: {}, may-alias: {1,7}]
  %s8 = sld [smem:[#allocation0]]
  $region114: #{tpu_custom_call.1} parent=0
    _
  %s10 = ssub.s32 1, %s8
  %s11 = scalar_select 0, %s10, %s8
  $region1: #{tpu_custom_call.1} parent=0
    #allocation3 [shape = 'u8[32768]{0}', space=vmem, size = 0x8000, scoped, tag = 'input window, operand 1']
    #allocation4 [shape = 's32[2]{0}', space=sflag, size = 0x8, scoped, tag = 'scoped memory for tpu_custom_call.1']
    #allocation5 [shape = 's32[2]{0}', space=sflag, size = 0x8, scoped, tag = 'scoped memory for tpu_custom_call.1']
    #allocation6 [shape = 'u8[16384]{0}', space=vmem, size = 0x4000, scoped, tag = 'input window, operand 2']
    #allocation7 [shape = 'u8[32768]{0}', space=vmem, size = 0x8000, scoped, tag = 'output window, operand 0']
    %12 = vsyncpa [#allocation4], 0
    %s13 = scalar_lea.sflag [#allocation4], 1
    %14 = vsyncpa %s13, 0
    %15 = vsyncpa [#allocation5], 0
    %s16 = scalar_lea.sflag [#allocation5], 1
    %17 = vsyncpa %s16, 0
    loop: start=0, step=1, limit=10
    $region2: #{tpu_custom_call.1} parent=1 // loop_pre_header
      _
    $region3: #{tpu_custom_call.1} parent=1 // loop_header
      %s19 = sphi 0, %s23
      %p20 = scmp.ge.s32.totalorder %s19, 10
      %s26 = sphi 0, %s38
      %s27 = sphi 0, %s34
      %s28 = sphi 0, %s26
      %s29 = sphi 0, %s27
      %s30 = sphi 0, %s28
      %s31 = sphi 0, %s29
      %s41 = sphi 0, %s43
      %s44 = sphi 0, %s41
      %s45 = sphi 0, %s44
      %s61 = sphi 0, %s45
      %s67 = sphi 0, %s69
      %s70 = sphi 0, %s67
      %s71 = sphi 0, %s70
      %s87 = sphi 0, %s71
      %s93 = sphi 0, %s95
      %s96 = sphi 0, %s93
      %s97 = sphi 0, %s96
      %s113 = sphi 0, %s97
      %s117 = sphi 0, %s117
      %s119 = sphi 0, %s117
      %s120 = sphi 0, %s119
      %s134 = sphi 0, %s120
      %s138 = sphi 0, %s138
      %s140 = sphi 0, %s138
      %s141 = sphi 0, %s140
      %s155 = sphi 0, %s141
      %s159 = sphi 0, %s159
      %s161 = sphi 0, %s159
      %s162 = sphi 0, %s161
      %s176 = sphi 0, %s162
      %s180 = sphi 0, %s180
      %s182 = sphi 0, %s180
      %s183 = sphi 0, %s182
      %s197 = sphi 0, %s183
      %s203 = sphi 0, %s205
      %s206 = sphi 0, %s203
      %s207 = sphi 0, %s206
      %s223 = sphi 0, %s207
    $region4: #{tpu_custom_call.1} parent=1 // loop_header_branch
      %22 = sbr.rel (%p20) target = $region8
    $region5: #{tpu_custom_call.1} parent=1 // loop_body
      %s24 = ssub.s32 %s19, 1
      %s25 = ssub.s32 %s19, 2
      %s32 = sadd.s32 1, %s27
      %p33 = scmp.ge.s32.totalorder %s32, 4
      %s34 = scalar_select %p33, 0, %s32
      %s35 = sadd.s32 1, %s26
      %s36 = scalar_select %p33, %s35, %s26
      %p37 = scmp.ge.s32.totalorder %s36, 2
      %s38 = scalar_select %p37, 0, %s36
      %s39 = ssub.s32 %s27, %s34
      %p40 = scmp.eq.s32.totalorder %s39, 0
      %s42 = sadd.s32 %s41, 1
      %s43 = scalar_select %p40, %s41, %s42
      %p46 = pneg %p40
      %p47 = scmp.eq.s32.totalorder %s19, 7
      %p48 = por %p46, %p47
      %p49 = scmp.ne.s32.totalorder %s41, %s44
      %p50 = scmp.eq.s32.totalorder %s19, 0
      %p51 = por %p49, %p50
      %p52 = scmp.ne.s32.totalorder %s41, %s44
      %p53 = scmp.eq.s32.totalorder %s24, 7
      %p54 = por %p52, %p53
      %p55 = scmp.ne.s32.totalorder %s44, %s45
      %p56 = scmp.eq.s32.totalorder %s24, 0
      %p57 = por %p55, %p56
      %p58 = scmp.ne.s32.totalorder %s44, %s45
      %p59 = scmp.eq.s32.totalorder %s25, 7
      %p60 = por %p58, %p59
      %p62 = scmp.ne.s32.totalorder %s45, %s61
      %p63 = scmp.eq.s32.totalorder %s25, 0
      %p64 = por %p62, %p63
      %s65 = ssub.s32 %s26, %s38
      %p66 = scmp.eq.s32.totalorder %s65, 0
      %s68 = sadd.s32 %s67, 1
      %s69 = scalar_select %p66, %s67, %s68
      %p72 = pneg %p66
      %p73 = scmp.eq.s32.totalorder %s19, 7
      %p74 = por %p72, %p73
      %p75 = scmp.ne.s32.totalorder %s67, %s70
      %p76 = scmp.eq.s32.totalorder %s19, 0
      %p77 = por %p75, %p76
      %p78 = scmp.ne.s32.totalorder %s67, %s70
      %p79 = scmp.eq.s32.totalorder %s24, 7
      %p80 = por %p78, %p79
      %p81 = scmp.ne.s32.totalorder %s70, %s71
      %p82 = scmp.eq.s32.totalorder %s24, 0
      %p83 = por %p81, %p82
      %p84 = scmp.ne.s32.totalorder %s70, %s71
      %p85 = scmp.eq.s32.totalorder %s25, 7
      %p86 = por %p84, %p85
      %p88 = scmp.ne.s32.totalorder %s71, %s87
      %p89 = scmp.eq.s32.totalorder %s25, 0
      %p90 = por %p88, %p89
      %s91 = ssub.s32 %s27, %s34
      %p92 = scmp.eq.s32.totalorder %s91, 0
      %s94 = sadd.s32 %s93, 1
      %s95 = scalar_select %p92, %s93, %s94
      %p98 = pneg %p92
      %p99 = scmp.eq.s32.totalorder %s19, 7
      %p100 = por %p98, %p99
      %p101 = scmp.ne.s32.totalorder %s93, %s96
      %p102 = scmp.eq.s32.totalorder %s19, 0
      %p103 = por %p101, %p102
      %p104 = scmp.ne.s32.totalorder %s93, %s96
      %p105 = scmp.eq.s32.totalorder %s24, 7
      %p106 = por %p104, %p105
      %p107 = scmp.ne.s32.totalorder %s96, %s97
      %p108 = scmp.eq.s32.totalorder %s24, 0
      %p109 = por %p107, %p108
      %p110 = scmp.ne.s32.totalorder %s96, %s97
      %p111 = scmp.eq.s32.totalorder %s25, 7
      %p112 = por %p110, %p111
      %p114 = scmp.ne.s32.totalorder %s97, %s113
      %p115 = scmp.eq.s32.totalorder %s25, 0
      %p116 = por %p114, %p115
      %s118 = sadd.s32 %s117, 1
      %p121 = scmp.eq.s32.totalorder %s19, 7
      %p122 = scmp.ne.s32.totalorder %s117, %s119
      %p123 = scmp.eq.s32.totalorder %s19, 0
      %p124 = por %p122, %p123
      %p125 = scmp.ne.s32.totalorder %s117, %s119
      %p126 = scmp.eq.s32.totalorder %s24, 7
      %p127 = por %p125, %p126
      %p128 = scmp.ne.s32.totalorder %s119, %s120
      %p129 = scmp.eq.s32.totalorder %s24, 0
      %p130 = por %p128, %p129
      %p131 = scmp.ne.s32.totalorder %s119, %s120
      %p132 = scmp.eq.s32.totalorder %s25, 7
      %p133 = por %p131, %p132
      %p135 = scmp.ne.s32.totalorder %s120, %s134
      %p136 = scmp.eq.s32.totalorder %s25, 0
      %p137 = por %p135, %p136
      %s139 = sadd.s32 %s138, 1
      %p142 = scmp.eq.s32.totalorder %s19, 7
      %p143 = scmp.ne.s32.totalorder %s138, %s140
      %p144 = scmp.eq.s32.totalorder %s19, 0
      %p145 = por %p143, %p144
      %p146 = scmp.ne.s32.totalorder %s138, %s140
      %p147 = scmp.eq.s32.totalorder %s24, 7
      %p148 = por %p146, %p147
      %p149 = scmp.ne.s32.totalorder %s140, %s141
      %p150 = scmp.eq.s32.totalorder %s24, 0
      %p151 = por %p149, %p150
      %p152 = scmp.ne.s32.totalorder %s140, %s141
      %p153 = scmp.eq.s32.totalorder %s25, 7
      %p154 = por %p152, %p153
      %p156 = scmp.ne.s32.totalorder %s141, %s155
      %p157 = scmp.eq.s32.totalorder %s25, 0
      %p158 = por %p156, %p157
      %s160 = sadd.s32 %s159, 1
      %p163 = scmp.eq.s32.totalorder %s19, 7
      %p164 = scmp.ne.s32.totalorder %s159, %s161
      %p165 = scmp.eq.s32.totalorder %s19, 0
      %p166 = por %p164, %p165
      %p167 = scmp.ne.s32.totalorder %s159, %s161
      %p168 = scmp.eq.s32.totalorder %s24, 7
      %p169 = por %p167, %p168
      %p170 = scmp.ne.s32.totalorder %s161, %s162
      %p171 = scmp.eq.s32.totalorder %s24, 0
      %p172 = por %p170, %p171
      %p173 = scmp.ne.s32.totalorder %s161, %s162
      %p174 = scmp.eq.s32.totalorder %s25, 7
      %p175 = por %p173, %p174
      %p177 = scmp.ne.s32.totalorder %s162, %s176
      %p178 = scmp.eq.s32.totalorder %s25, 0
      %p179 = por %p177, %p178
      %s181 = sadd.s32 %s180, 1
      %p184 = scmp.eq.s32.totalorder %s19, 7
      %p185 = scmp.ne.s32.totalorder %s180, %s182
      %p186 = scmp.eq.s32.totalorder %s19, 0
      %p187 = por %p185, %p186
      %p188 = scmp.ne.s32.totalorder %s180, %s182
      %p189 = scmp.eq.s32.totalorder %s24, 7
      %p190 = por %p188, %p189
      %p191 = scmp.ne.s32.totalorder %s182, %s183
      %p192 = scmp.eq.s32.totalorder %s24, 0
      %p193 = por %p191, %p192
      %p194 = scmp.ne.s32.totalorder %s182, %s183
      %p195 = scmp.eq.s32.totalorder %s25, 7
      %p196 = por %p194, %p195
      %p198 = scmp.ne.s32.totalorder %s183, %s197
      %p199 = scmp.eq.s32.totalorder %s25, 0
      %p200 = por %p198, %p199
      %s201 = ssub.s32 %s26, %s38
      %p202 = scmp.eq.s32.totalorder %s201, 0
      %s204 = sadd.s32 %s203, 1
      %s205 = scalar_select %p202, %s203, %s204
      %p208 = pneg %p202
      %p209 = scmp.eq.s32.totalorder %s19, 7
      %p210 = por %p208, %p209
      %p211 = scmp.ne.s32.totalorder %s203, %s206
      %p212 = scmp.eq.s32.totalorder %s19, 0
      %p213 = por %p211, %p212
      %p214 = scmp.ne.s32.totalorder %s203, %s206
      %p215 = scmp.eq.s32.totalorder %s24, 7
      %p216 = por %p214, %p215
      %p217 = scmp.ne.s32.totalorder %s206, %s207
      %p218 = scmp.eq.s32.totalorder %s24, 0
      %p219 = por %p217, %p218
      %p220 = scmp.ne.s32.totalorder %s206, %s207
      %p221 = scmp.eq.s32.totalorder %s25, 7
      %p222 = por %p220, %p221
      %p224 = scmp.ne.s32.totalorder %s207, %s223
      %p225 = scmp.eq.s32.totalorder %s25, 0
      %p226 = por %p224, %p225
      %p227 = scmp.le.s32.totalorder 1, %s19
      %p228 = scmp.lt.s32.totalorder %s19, 9
      %p229 = pnand %p227, %p228
      %p230 = pneg %p229
      // Predicated region
      $region9: #{tpu_custom_call.1} parent=5 // pred_check
        _
      $region10: #{tpu_custom_call.1} parent=5 // pred_check_branch
        %232 = sbr.rel (%p229) target = $region12
      $region11: #{tpu_custom_call.1} parent=5 // pred_region
        %s233 = ssub.s32 %s19, 1
        // Predicated region
        $region13: #{tpu_custom_call.1} parent=11 // pred_check
          %p234 = pneg %p130
        $region14: #{tpu_custom_call.1} parent=11 // pred_check_branch
          %236 = sbr.rel (%p234) target = $region16
        $region15: #{tpu_custom_call.1} parent=11 // pred_region
          _
        $region16: #{tpu_custom_call.1} parent=11 // pred_fallthru
          _
        // Predicated region
        $region17: #{tpu_custom_call.1} parent=11 // pred_check
          %p237 = pneg %p151
        $region18: #{tpu_custom_call.1} parent=11 // pred_check_branch
          %239 = sbr.rel (%p237) target = $region20
        $region19: #{tpu_custom_call.1} parent=11 // pred_region
          _
        $region20: #{tpu_custom_call.1} parent=11 // pred_fallthru
          _
        // Predicated region
        $region21: #{tpu_custom_call.1} parent=11 // pred_check
          %p240 = pneg %p172
        $region22: #{tpu_custom_call.1} parent=11 // pred_check_branch
          %242 = sbr.rel (%p240) target = $region24
        $region23: #{tpu_custom_call.1} parent=11 // pred_region
          _
        $region24: #{tpu_custom_call.1} parent=11 // pred_fallthru
          _
        // Predicated region
        $region25: #{tpu_custom_call.1} parent=11 // pred_check
          %p243 = pneg %p193
        $region26: #{tpu_custom_call.1} parent=11 // pred_check_branch
          %245 = sbr.rel (%p243) target = $region28
        $region27: #{tpu_custom_call.1} parent=11 // pred_region
          _
        $region28: #{tpu_custom_call.1} parent=11 // pred_fallthru
          _
      $region12: #{tpu_custom_call.1} parent=5 // pred_fallthru
        _
      %p246 = scmp.lt.s32.totalorder %s19, 8
      // Predicated region
      $region29: #{tpu_custom_call.1} parent=5 // pred_check
        %p247 = pneg %p246
      $region30: #{tpu_custom_call.1} parent=5 // pred_check_branch
        %249 = sbr.rel (%p247) target = $region32
      $region31: #{tpu_custom_call.1} parent=5 // pred_region
        // Predicated region
        $region33: #{tpu_custom_call.1} parent=31 // pred_check
          %p250 = pneg %p51
        $region34: #{tpu_custom_call.1} parent=31 // pred_check_branch
          %252 = sbr.rel (%p250) target = $region36
        $region35: #{tpu_custom_call.1} parent=31 // pred_region
          %s253 = smul.u32 16, %s27
          %p254 = scmp.lt.s32.totalorder %s253, 63
          %s255 = scalar_select %p254, %s253, 63
          %s256 = smul.addr %s255, 8
          %s257 = scalar_lea.vmem %s0, %s256
          %s258 = smul.u32 16, %s27
        $region36: #{tpu_custom_call.1} parent=31 // pred_fallthru
          _
        // Predicated region
        $region37: #{tpu_custom_call.1} parent=31 // pred_check
          %p259 = pneg %p77
        $region38: #{tpu_custom_call.1} parent=31 // pred_check_branch
          %261 = sbr.rel (%p259) target = $region40
        $region39: #{tpu_custom_call.1} parent=31 // pred_region
          %s262 = sand.u32 %s67, 1
          %s263 = scalar_lea.sflag [#allocation4], %s262
          %s264 = sand.u32 %s67, 1
          %s265 = smul.addr %s264, 32
          %s266 = scalar_lea.vmem [#allocation3], %s265
          %s268 = ssub.s32 512, 512
          %269 = vsyncadd %s263, %s268
          %s270 = smul.addr %s26, 128
          %s271 = scalar_lea.hbm %s1, %s270
          %s272 = sshll.u32 %s266, 4
          %s273 = int_to_ptr.vmem [resolvable:$true] %s272
          %278 = dma.hbm_to_vmem [thread:$0]  %s271, 512, %s273, %s263, 256, 128, 8
        $region40: #{tpu_custom_call.1} parent=31 // pred_fallthru
          _
        // Predicated region
        $region41: #{tpu_custom_call.1} parent=31 // pred_check
          %p279 = pneg %p103
        $region42: #{tpu_custom_call.1} parent=31 // pred_check_branch
          %281 = sbr.rel (%p279) target = $region44
        $region43: #{tpu_custom_call.1} parent=31 // pred_region
          %s282 = sand.u32 %s93, 1
          %s283 = sand.u32 %s93, 1
          %s284 = smul.addr %s283, 16
          %s285 = scalar_lea.vmem [#allocation6], %s284
          %s286 = smul.addr %s27, 4
          %s287 = scalar_lea.vmem %s2, %s286
          // Predicated region
          $region45: #{tpu_custom_call.1} parent=43 // pred_check
            _
          $region46: #{tpu_custom_call.1} parent=43 // pred_check_branch
            %289 = sbr.rel (0) target = $region48
          $region47: #{tpu_custom_call.1} parent=43 // pred_region
            // Predicated region
            $region49: #{tpu_custom_call.1} parent=47 // pred_check
              _
            $region50: #{tpu_custom_call.1} parent=47 // pred_check_branch
              %291 = sbr.rel target = $region52
            $region51: #{tpu_custom_call.1} parent=47 // pred_region
              // Predicated region
              $region64: #{tpu_custom_call.1} parent=51 // pred_check
                _
              $region65: #{tpu_custom_call.1} parent=51 // pred_check_branch
                %312 = sbr.rel (0) target = $region67
              $region66: #{tpu_custom_call.1} parent=51 // pred_region
                loop: start=0, step=1, limit=1
                $region68: #{tpu_custom_call.1} parent=66 // loop_pre_header
                  _
                $region69: #{tpu_custom_call.1} parent=66 // loop_header
                  %s314 = sphi 0, %s318
                  %p315 = scmp.ge.s32.totalorder %s314, 1
                  %s319 = sphi %s287, %s287
                  %s320 = sphi %s285, %s285
                $region70: #{tpu_custom_call.1} parent=66 // loop_header_branch
                  %317 = sbr.rel (%p315) target = $region74
                $region71: #{tpu_custom_call.1} parent=66 // loop_body
                  _
                $region72: #{tpu_custom_call.1} parent=66 // loop_footer
                  %s318 = sadd.s32 1, %s314
                $region73: #{tpu_custom_call.1} parent=66 // loop_footer_branch
                  %313 = sbr.rel target = $region69
                $region74: #{tpu_custom_call.1} parent=66 // loop_exit
                  _
                loop: start=0, step=1, limit=1
                $region75: #{tpu_custom_call.1} parent=66 // loop_pre_header
                  _
                $region76: #{tpu_custom_call.1} parent=66 // loop_header
                  %s323 = sphi 0, %s327
                  %p324 = scmp.ge.s32.totalorder %s323, 1
                  %s328 = sphi %s287, %s287
                  %s329 = sphi %s285, %s285
                $region77: #{tpu_custom_call.1} parent=66 // loop_header_branch
                  %326 = sbr.rel (%p324) target = $region81
                $region78: #{tpu_custom_call.1} parent=66 // loop_body
                  %v330 = vld [vmem:[%s328] sm:$0xf]
                  %331 = vst [vmem:[%s329] sm:$0xf] %v330
                  %v332 = vld [vmem:[%s328 + $0x10] sm:$0xf]
                  %333 = vst [vmem:[%s329 + $0x4] sm:$0xf] %v332
                  %v334 = vld [vmem:[%s328 + $0x20] sm:$0xf]
                  %335 = vst [vmem:[%s329 + $0x8] sm:$0xf] %v334
                  %v336 = vld [vmem:[%s328 + $0x30] sm:$0xf]
                  %337 = vst [vmem:[%s329 + $0xc] sm:$0xf] %v336
                $region79: #{tpu_custom_call.1} parent=66 // loop_footer
                  %s327 = sadd.s32 1, %s323
                $region80: #{tpu_custom_call.1} parent=66 // loop_footer_branch
                  %322 = sbr.rel target = $region76
                $region81: #{tpu_custom_call.1} parent=66 // loop_exit
                  _
              $region67: #{tpu_custom_call.1} parent=51 // pred_fallthru
                _
            $region52: #{tpu_custom_call.1} parent=47 // pred_fallthru
              _
            // Predicated region
            $region53: #{tpu_custom_call.1} parent=47 // pred_check
              _
            $region54: #{tpu_custom_call.1} parent=47 // pred_check_branch
              %293 = sbr.rel (0) target = $region56
            $region55: #{tpu_custom_call.1} parent=47 // pred_region
              loop: start=0, step=1, limit=1
              $region57: #{tpu_custom_call.1} parent=55 // loop_pre_header
                _
              $region58: #{tpu_custom_call.1} parent=55 // loop_header
                %s296 = sphi 0, %s300
                %p297 = scmp.ge.s32.totalorder %s296, 1
                %s301 = sphi %s287, %s287
                %s302 = sphi %s285, %s285
              $region59: #{tpu_custom_call.1} parent=55 // loop_header_branch
                %299 = sbr.rel (%p297) target = $region63
              $region60: #{tpu_custom_call.1} parent=55 // loop_body
                %v303 = vld [vmem:[%s301] sm:$0xf]
                %304 = vst [vmem:[%s302] sm:$0xf] %v303
                %v305 = vld [vmem:[%s301 + $0x10] sm:$0xf]
                %306 = vst [vmem:[%s302 + $0x4] sm:$0xf] %v305
                %v307 = vld [vmem:[%s301 + $0x20] sm:$0xf]
                %308 = vst [vmem:[%s302 + $0x8] sm:$0xf] %v307
                %v309 = vld [vmem:[%s301 + $0x30] sm:$0xf]
                %310 = vst [vmem:[%s302 + $0xc] sm:$0xf] %v309
              $region61: #{tpu_custom_call.1} parent=55 // loop_footer
                %s300 = sadd.s32 1, %s296
              $region62: #{tpu_custom_call.1} parent=55 // loop_footer_branch
                %295 = sbr.rel target = $region58
              $region63: #{tpu_custom_call.1} parent=55 // loop_exit
                _
            $region56: #{tpu_custom_call.1} parent=47 // pred_fallthru
              _
          $region48: #{tpu_custom_call.1} parent=43 // pred_fallthru
            _
          %338 = vnop
        $region44: #{tpu_custom_call.1} parent=31 // pred_fallthru
          _
      $region32: #{tpu_custom_call.1} parent=5 // pred_fallthru
        _
      %p339 = scmp.le.s32.totalorder 1, %s19
      %p340 = scmp.lt.s32.totalorder %s19, 9
      %p341 = pnand %p339, %p340
      %p342 = pneg %p341
      // Predicated region
      $region82: #{tpu_custom_call.1} parent=5 // pred_check
        _
      $region83: #{tpu_custom_call.1} parent=5 // pred_check_branch
        %344 = sbr.rel (%p341) target = $region85
      $region84: #{tpu_custom_call.1} parent=5 // pred_region
        %s345 = ssub.s32 %s19, 1
        %s346 = sand.u32 %s70, 1
        %s347 = scalar_lea.sflag [#allocation4], %s346
        %s348 = sand.u32 %s70, 1
        %s349 = smul.addr %s348, 32
        %s350 = scalar_lea.vmem [#allocation3], %s349
        // Predicated region
        $region86: #{tpu_custom_call.1} parent=84 // pred_check
          %p351 = pneg %p83
        $region87: #{tpu_custom_call.1} parent=84 // pred_check_branch
          %353 = sbr.rel (%p351) target = $region89
        $region88: #{tpu_custom_call.1} parent=84 // pred_region
          %354 = dma.done %s347, 512
        $region89: #{tpu_custom_call.1} parent=84 // pred_fallthru
          _
        %s355 = sand.u32 %s96, 1
        %s356 = sand.u32 %s96, 1
        %s357 = smul.addr %s356, 16
        %s358 = scalar_lea.vmem [#allocation6], %s357
        // Predicated region
        $region90: #{tpu_custom_call.1} parent=84 // pred_check
          %p359 = pneg %p109
        $region91: #{tpu_custom_call.1} parent=84 // pred_check_branch
          %361 = sbr.rel (%p359) target = $region93
        $region92: #{tpu_custom_call.1} parent=84 // pred_region
          _
        $region93: #{tpu_custom_call.1} parent=84 // pred_fallthru
          _
        %s362 = smul.u32 16, %s29
        %p363 = scmp.lt.s32.totalorder %s362, 63
        %s364 = scalar_select %p363, %s362, 63
        %s365 = smul.addr %s364, 8
        %s366 = scalar_lea.vmem %s0, %s365
        %p367 = pneg %p57
        %p368 = pneg %p54
        %s369 = sand.u32 %s70, 1
        %s370 = scalar_lea.sflag [#allocation4], %s369
        %s371 = sand.u32 %s70, 1
        %s372 = smul.addr %s371, 32
        %s373 = scalar_lea.vmem [#allocation3], %s372
        %p374 = pneg %p83
        %p375 = pneg %p80
        %s376 = sand.u32 %s96, 1
        %s377 = sand.u32 %s96, 1
        %s378 = smul.addr %s377, 16
        %s379 = scalar_lea.vmem [#allocation6], %s378
        %p380 = pneg %p109
        %p381 = pneg %p106
        %p382 = pneg %p130
        %p383 = pneg %p127
        %p384 = pneg %p151
        %p385 = pneg %p148
        %p386 = pneg %p172
        %p387 = pneg %p169
        %p388 = pneg %p193
        %p389 = pneg %p190
        %p390 = pneg %p219
        %p391 = pneg %p216
        %s392 = sand.u32 %s206, 1
        %s393 = scalar_lea.sflag [#allocation5], %s392
        %s394 = sand.u32 %s206, 1
        %s395 = smul.addr %s394, 32
        %s396 = scalar_lea.vmem [#allocation7], %s395
        %s397 = smul.u32 16, %s29
        %p398 = scmp.lt.s32.totalorder %s397, 63
        %s399 = scalar_select %p398, %s397, 63
        %s400 = smul.addr %s399, 8
        %s401 = scalar_lea.vmem %s0, %s400
        %s402 = smul.u32 16, %s29
        %p404 = scmp.eq.s32.totalorder %s29, 0
        // Predicated region
        $region94: #{tpu_custom_call.1} parent=84 // pred_check
          %p405 = pneg %p404
        $region95: #{tpu_custom_call.1} parent=84 // pred_check_branch
          %407 = sbr.rel (%p405) target = $region97
        $region96: #{tpu_custom_call.1} parent=84 // pred_region
          %408 = vst [vmem:[#allocation2] sm:$0xff] 0.0
          %409 = vst [vmem:[#allocation2 + $0x8] sm:$0xff] 0.0
          %410 = vst [vmem:[#allocation2 + $0x10] sm:$0xff] 0.0
          %411 = vst [vmem:[#allocation2 + $0x18] sm:$0xff] 0.0
        $region97: #{tpu_custom_call.1} parent=84 // pred_fallthru
          _
        %v412 = vlaneseq
        %v413 = vand.u32 %v412, 127
        %v414 = vld [vmem:[%s401] sm:$0xff]
        %v415 = vld [vmem:[%s401 + $0x8] sm:$0xff]
        %v416 = vld [vmem:[%s401 + $0x10] sm:$0xff]
        %v417 = vld [vmem:[%s401 + $0x18] sm:$0xff]
        %v418 = vld [vmem:[%s401 + $0x20] sm:$0xff]
        %v419 = vld [vmem:[%s401 + $0x28] sm:$0xff]
        %v420 = vld [vmem:[%s401 + $0x30] sm:$0xff]
        %v421 = vld [vmem:[%s401 + $0x38] sm:$0xff]
        %v422 = vld [vmem:[%s401 + $0x40] sm:$0xff]
        %v423 = vld [vmem:[%s401 + $0x48] sm:$0xff]
        %v424 = vld [vmem:[%s401 + $0x50] sm:$0xff]
        %v425 = vld [vmem:[%s401 + $0x58] sm:$0xff]
        %v426 = vld [vmem:[%s401 + $0x60] sm:$0xff]
        %v427 = vld [vmem:[%s401 + $0x68] sm:$0xff]
        %v428 = vld [vmem:[%s401 + $0x70] sm:$0xff]
        %v429 = vld [vmem:[%s401 + $0x78] sm:$0xff]
        %s430 = smul.u32 %s28, 128
        %v431 = vstv %s430
        %v432 = vsub.s32 %v414, %v431
        %v433 = vsub.s32 %v415, %v431
        %v434 = vsub.s32 %v416, %v431
        %v435 = vsub.s32 %v417, %v431
        %v436 = vsub.s32 %v418, %v431
        %v437 = vsub.s32 %v419, %v431
        %v438 = vsub.s32 %v420, %v431
        %v439 = vsub.s32 %v421, %v431
        %v440 = vsub.s32 %v422, %v431
        %v441 = vsub.s32 %v423, %v431
        %v442 = vsub.s32 %v424, %v431
        %v443 = vsub.s32 %v425, %v431
        %v444 = vsub.s32 %v426, %v431
        %v445 = vsub.s32 %v427, %v431
        %v446 = vsub.s32 %v428, %v431
        %v447 = vsub.s32 %v429, %v431
        %448 = vset.pattern.permute.xlu0 0
        %449 = vperm.xlu0 %448, %v432
        %v450 = vpop.permute.xlu0 %449
        %451 = vset.pattern.permute.xlu0 0
        %452 = vperm.xlu0 %451, %v433
        %v453 = vpop.permute.xlu0 %452
        %454 = vset.pattern.permute.xlu0 0
        %455 = vperm.xlu0 %454, %v434
        %v456 = vpop.permute.xlu0 %455
        %457 = vset.pattern.permute.xlu0 0
        %458 = vperm.xlu0 %457, %v435
        %v459 = vpop.permute.xlu0 %458
        %460 = vset.pattern.permute.xlu0 0
        %461 = vperm.xlu0 %460, %v436
        %v462 = vpop.permute.xlu0 %461
        %463 = vset.pattern.permute.xlu0 0
        %464 = vperm.xlu0 %463, %v437
        %v465 = vpop.permute.xlu0 %464
        %466 = vset.pattern.permute.xlu0 0
        %467 = vperm.xlu0 %466, %v438
        %v468 = vpop.permute.xlu0 %467
        %469 = vset.pattern.permute.xlu0 0
        %470 = vperm.xlu0 %469, %v439
        %v471 = vpop.permute.xlu0 %470
        %472 = vset.pattern.permute.xlu0 0
        %473 = vperm.xlu0 %472, %v440
        %v474 = vpop.permute.xlu0 %473
        %475 = vset.pattern.permute.xlu0 0
        %476 = vperm.xlu0 %475, %v441
        %v477 = vpop.permute.xlu0 %476
        %478 = vset.pattern.permute.xlu0 0
        %479 = vperm.xlu0 %478, %v442
        %v480 = vpop.permute.xlu0 %479
        %481 = vset.pattern.permute.xlu0 0
        %482 = vperm.xlu0 %481, %v443
        %v483 = vpop.permute.xlu0 %482
        %484 = vset.pattern.permute.xlu0 0
        %485 = vperm.xlu0 %484, %v444
        %v486 = vpop.permute.xlu0 %485
        %487 = vset.pattern.permute.xlu0 0
        %488 = vperm.xlu0 %487, %v445
        %v489 = vpop.permute.xlu0 %488
        %490 = vset.pattern.permute.xlu0 0
        %491 = vperm.xlu0 %490, %v446
        %v492 = vpop.permute.xlu0 %491
        %493 = vset.pattern.permute.xlu0 0
        %494 = vperm.xlu0 %493, %v447
        %v495 = vpop.permute.xlu0 %494
        %vm496 = vcmp.eq.s32.totalorder %v413, %v450
        %vm497 = vcmp.eq.s32.totalorder %v413, %v453
        %vm498 = vcmp.eq.s32.totalorder %v413, %v456
        %vm499 = vcmp.eq.s32.totalorder %v413, %v459
        %vm500 = vcmp.eq.s32.totalorder %v413, %v462
        %vm501 = vcmp.eq.s32.totalorder %v413, %v465
        %vm502 = vcmp.eq.s32.totalorder %v413, %v468
        %vm503 = vcmp.eq.s32.totalorder %v413, %v471
        %vm504 = vcmp.eq.s32.totalorder %v413, %v474
        %vm505 = vcmp.eq.s32.totalorder %v413, %v477
        %vm506 = vcmp.eq.s32.totalorder %v413, %v480
        %vm507 = vcmp.eq.s32.totalorder %v413, %v483
        %vm508 = vcmp.eq.s32.totalorder %v413, %v486
        %vm509 = vcmp.eq.s32.totalorder %v413, %v489
        %vm510 = vcmp.eq.s32.totalorder %v413, %v492
        %vm511 = vcmp.eq.s32.totalorder %v413, %v495
        %v512 = vsel %vm496, 1, 0
        %v513 = vsel %vm497, 1, 0
        %v514 = vsel %vm498, 1, 0
        %v515 = vsel %vm499, 1, 0
        %v516 = vsel %vm500, 1, 0
        %v517 = vsel %vm501, 1, 0
        %v518 = vsel %vm502, 1, 0
        %v519 = vsel %vm503, 1, 0
        %v520 = vsel %vm504, 1, 0
        %v521 = vsel %vm505, 1, 0
        %v522 = vsel %vm506, 1, 0
        %v523 = vsel %vm507, 1, 0
        %v524 = vsel %vm508, 1, 0
        %v525 = vsel %vm509, 1, 0
        %v526 = vsel %vm510, 1, 0
        %v527 = vsel %vm511, 1, 0
        %v528 = vcvt.s32.f32 %v512
        %v529 = vcvt.s32.f32 %v513
        %v530 = vcvt.s32.f32 %v514
        %v531 = vcvt.s32.f32 %v515
        %v532 = vcvt.s32.f32 %v516
        %v533 = vcvt.s32.f32 %v517
        %v534 = vcvt.s32.f32 %v518
        %v535 = vcvt.s32.f32 %v519
        %v536 = vcvt.s32.f32 %v520
        %v537 = vcvt.s32.f32 %v521
        %v538 = vcvt.s32.f32 %v522
        %v539 = vcvt.s32.f32 %v523
        %v540 = vcvt.s32.f32 %v524
        %v541 = vcvt.s32.f32 %v525
        %v542 = vcvt.s32.f32 %v526
        %v543 = vcvt.s32.f32 %v527
        %v544 = vpack.c.bf16 %v529, %v528
        %v545 = vpack.c.bf16 %v531, %v530
        %v546 = vpack.c.bf16 %v533, %v532
        %v547 = vpack.c.bf16 %v535, %v534
        %v548 = vpack.c.bf16 %v537, %v536
        %v549 = vpack.c.bf16 %v539, %v538
        %v550 = vpack.c.bf16 %v541, %v540
        %v551 = vpack.c.bf16 %v543, %v542
        %v552 = vld [vmem:[#allocation2] sm:$0xff]
        %v553 = vld [vmem:[#allocation2 + $0x8] sm:$0xff]
        %v554 = vld [vmem:[#allocation2 + $0x10] sm:$0xff]
        %v555 = vld [vmem:[#allocation2 + $0x18] sm:$0xff]
        %v556 = vld [vmem:[%s358] sm:$0xf]
        %v557 = vld [vmem:[%s358 + $0x4] sm:$0xf]
        %v558 = vld [vmem:[%s358 + $0x8] sm:$0xf]
        %v559 = vld [vmem:[%s358 + $0xc] sm:$0xf]
        %v564 = vunpack.c.l.b16 %v556
        %v565 = vunpack.c.l.b16 %v557
        %v566 = vunpack.c.l.b16 %v558
        %v567 = vunpack.c.l.b16 %v559
        %v568 = vpack.c.b16 %v565, %v564
        %v569 = vpack.c.b16 %v567, %v566
        %572 = vmatprep.subr.bf16.mxu0 0
        %573 = vmatpush1.bf16.msra.mxu0 %v544
        %574 = vmatprep.subr.bf16.mxu0 0
        %575 = vmatpush1.bf16.msra.mxu0 %v545
        %576 = vmatprep.subr.bf16.mxu0 0
        %577 = vmatpush1.bf16.msra.mxu0 %v546
        %578 = vmatprep.subr.bf16.mxu0 0
        %579 = vmatpush1.bf16.msra.mxu0 %v547
        %580 = vmatprep.subr.bf16.mxu0 0
        %581 = vmatpush1.bf16.msra.mxu0 %v548
        %582 = vmatprep.subr.bf16.mxu0 0
        %583 = vmatpush1.bf16.msra.mxu0 %v549
        %584 = vmatprep.subr.bf16.mxu0 0
        %585 = vmatpush1.bf16.msra.mxu0 %v550
        %586 = vmatprep.subr.bf16.mxu0 0
        %587 = vmatpush1.bf16.msra.mxu0 %v551
        %588 = vmatprep.subr.bf16.mxu0 0
        %589 = vmatpush1.bf16.msra.mxu0 0
        %590 = vmatprep.subr.bf16.mxu0 0
        %591 = vmatpush1.bf16.msra.mxu0 0
        %592 = vmatprep.subr.bf16.mxu0 0
        %593 = vmatpush1.bf16.msra.mxu0 0
        %594 = vmatprep.subr.bf16.mxu0 0
        %595 = vmatpush1.bf16.msra.mxu0 0
        %596 = vmatprep.subr.bf16.mxu0 0
        %597 = vmatpush1.bf16.msra.mxu0 0
        %598 = vmatprep.subr.bf16.mxu0 0
        %599 = vmatpush1.bf16.msra.mxu0 0
        %600 = vmatprep.subr.bf16.mxu0 0
        %601 = vmatpush1.bf16.msra.mxu0 0
        %602 = vmatprep.subr.bf16.mxu0 0
        %603 = vmatpush1.bf16.msra.mxu0 0
        %604 = vmatprep.mubr.bf16.mxu0 0
        %605 = vmatmul.mubr.bf16.gmra.mrb[0].mxu0 %v568
        %v606 = vpop.f32.mrb[0].mxu0
        %v607 = vadd.f32 0.0, %v606
        %v608 = vpop.f32.mrb[0].mxu0
        %v609 = vpop.f32.mrb[0].mxu0
        %v610 = vadd.f32 0.0, %v609
        %v611 = vpop.f32.mrb[0].mxu0
        %612 = vmatprep.mubr.bf16.mxu0 0
        %613 = vmatmul.mubr.bf16.gmra.mrb[0].mxu0 %v569
        %v614 = vpop.f32.mrb[0].mxu0
        %v615 = vadd.f32 0.0, %v614
        %v616 = vpop.f32.mrb[0].mxu0
        %v617 = vpop.f32.mrb[0].mxu0
        %v618 = vadd.f32 0.0, %v617
        %v619 = vpop.f32.mrb[0].mxu0
        %620 = vdwg.mxu0
        %v621 = vadd.f32 %v552, %v607
        %v622 = vadd.f32 %v553, %v610
        %v623 = vadd.f32 %v554, %v615
        %v624 = vadd.f32 %v555, %v618
        %625 = vst [vmem:[#allocation2] sm:$0xff] %v621
        %626 = vst [vmem:[#allocation2 + $0x8] sm:$0xff] %v622
        %627 = vst [vmem:[#allocation2 + $0x10] sm:$0xff] %v623
        %628 = vst [vmem:[#allocation2 + $0x18] sm:$0xff] %v624
        %p629 = scmp.eq.s32.totalorder %s29, 3
        // Predicated region
        $region98: #{tpu_custom_call.1} parent=84 // pred_check
          %p630 = pneg %p629
        $region99: #{tpu_custom_call.1} parent=84 // pred_check_branch
          %632 = sbr.rel (%p630) target = $region101
        $region100: #{tpu_custom_call.1} parent=84 // pred_region
          %v633 = vld [vmem:[%s3] sm:$0xff]
          %v634 = vld [vmem:[%s3 + $0x8] sm:$0xff]
          %v635 = vld [vmem:[%s3 + $0x10] sm:$0xff]
          %v636 = vld [vmem:[%s3 + $0x18] sm:$0xff]
          %v637 = vld [vmem:[#allocation2] sm:$0xff]
          %v638 = vld [vmem:[#allocation2 + $0x8] sm:$0xff]
          %v639 = vld [vmem:[#allocation2 + $0x10] sm:$0xff]
          %v640 = vld [vmem:[#allocation2 + $0x18] sm:$0xff]
          %v641 = vld [vmem:[%s4] sm:$0xff]
          %v642 = vld [vmem:[%s4 + $0x8] sm:$0xff]
          %v643 = vld [vmem:[%s4 + $0x10] sm:$0xff]
          %v644 = vld [vmem:[%s4 + $0x18] sm:$0xff]
          %646 = vset.pattern.permute.xlu0 0
          %647 = vperm.xlu0 %646, %v641
          %v648 = vpop.permute.xlu0 %647
          %651 = vset.pattern.permute.xlu0 0
          %652 = vperm.xlu0 %651, %v642
          %v653 = vpop.permute.xlu0 %652
          %656 = vset.pattern.permute.xlu0 0
          %657 = vperm.xlu0 %656, %v643
          %v658 = vpop.permute.xlu0 %657
          %661 = vset.pattern.permute.xlu0 0
          %662 = vperm.xlu0 %661, %v644
          %v663 = vpop.permute.xlu0 %662
          %vm665 = vcmask 261120
          %v667 = vsel %vm665, %v633, 0
          %v670 = vsel %vm665, %v634, 0
          %v673 = vsel %vm665, %v635, 0
          %v676 = vsel %vm665, %v636, 0
          %678 = vmatprep.subr.mxu0 0.0
          %679 = vmatpush1.msra.mxu0 %v637
          %680 = vmatprep.subr.mxu0 0.0
          %681 = vmatpush1.msra.mxu0 %v638
          %682 = vmatprep.subr.mxu0 0.0
          %683 = vmatpush1.msra.mxu0 %v639
          %684 = vmatprep.subr.mxu0 0.0
          %685 = vmatpush1.msra.mxu0 %v640
          %686 = vmatprep.subr.mxu0 0.0
          %687 = vmatpush1.msra.mxu0 0.0
          %688 = vmatprep.subr.mxu0 0.0
          %689 = vmatpush1.msra.mxu0 0.0
          %690 = vmatprep.subr.mxu0 0.0
          %691 = vmatpush1.msra.mxu0 0.0
          %692 = vmatprep.subr.mxu0 0.0
          %693 = vmatpush1.msra.mxu0 0.0
          %694 = vmatprep.subr.mxu0 0.0
          %695 = vmatpush1.msra.mxu0 0.0
          %696 = vmatprep.subr.mxu0 0.0
          %697 = vmatpush1.msra.mxu0 0.0
          %698 = vmatprep.subr.mxu0 0.0
          %699 = vmatpush1.msra.mxu0 0.0
          %700 = vmatprep.subr.mxu0 0.0
          %701 = vmatpush1.msra.mxu0 0.0
          %702 = vmatprep.subr.mxu0 0.0
          %703 = vmatpush1.msra.mxu0 0.0
          %704 = vmatprep.subr.mxu0 0.0
          %705 = vmatpush1.msra.mxu0 0.0
          %706 = vmatprep.subr.mxu0 0.0
          %707 = vmatpush1.msra.mxu0 0.0
          %708 = vmatprep.subr.mxu0 0.0
          %709 = vmatpush1.msra.mxu0 0.0
          %710 = vmatprep.subr.mxu0 0.0
          %711 = vmatpush1.msra.mxu0 0.0
          %712 = vmatprep.subr.mxu0 0.0
          %713 = vmatpush1.msra.mxu0 0.0
          %714 = vmatprep.subr.mxu0 0.0
          %715 = vmatpush1.msra.mxu0 0.0
          %716 = vmatprep.subr.mxu0 0.0
          %717 = vmatpush1.msra.mxu0 0.0
          %718 = vmatprep.subr.mxu0 0.0
          %719 = vmatpush1.msra.mxu0 0.0
          %720 = vmatprep.subr.mxu0 0.0
          %721 = vmatpush1.msra.mxu0 0.0
          %722 = vmatprep.subr.mxu0 0.0
          %723 = vmatpush1.msra.mxu0 0.0
          %724 = vmatprep.subr.mxu0 0.0
          %725 = vmatpush1.msra.mxu0 0.0
          %726 = vmatprep.subr.mxu0 0.0
          %727 = vmatpush1.msra.mxu0 0.0
          %728 = vmatprep.subr.mxu0 0.0
          %729 = vmatpush1.msra.mxu0 0.0
          %730 = vmatprep.subr.mxu0 0.0
          %731 = vmatpush1.msra.mxu0 0.0
          %732 = vmatprep.subr.mxu0 0.0
          %733 = vmatpush1.msra.mxu0 0.0
          %734 = vmatprep.subr.mxu0 0.0
          %735 = vmatpush1.msra.mxu0 0.0
          %736 = vmatprep.subr.mxu0 0.0
          %737 = vmatpush1.msra.mxu0 0.0
          %738 = vmatprep.subr.mxu0 0.0
          %739 = vmatpush1.msra.mxu0 0.0
          %740 = vmatprep.subr.mxu0 0.0
          %741 = vmatpush1.msra.mxu0 0.0
          %742 = vmatprep.mubr.f32.mxu0 0.0
          %743 = vmatmul.mubr.f32.gmra.mrb[0].mxu0 %v667
          %v744 = vpop.f32.mrb[0].mxu0
          %v745 = vadd.f32 %v648, %v744
          %v746 = vpop.f32.mrb[0].mxu0
          %747 = vmatprep.mubr.f32.mxu0 0.0
          %748 = vmatmul.mubr.f32.gmra.mrb[0].mxu0 %v670
          %v749 = vpop.f32.mrb[0].mxu0
          %v750 = vadd.f32 %v653, %v749
          %v751 = vpop.f32.mrb[0].mxu0
          %752 = vmatprep.mubr.f32.mxu0 0.0
          %753 = vmatmul.mubr.f32.gmra.mrb[0].mxu0 %v673
          %v754 = vpop.f32.mrb[0].mxu0
          %v755 = vadd.f32 %v658, %v754
          %v756 = vpop.f32.mrb[0].mxu0
          %757 = vmatprep.mubr.f32.mxu0 0.0
          %758 = vmatmul.mubr.f32.gmra.mrb[0].mxu0 %v676
          %v759 = vpop.f32.mrb[0].mxu0
          %v760 = vadd.f32 %v663, %v759
          %v761 = vpop.f32.mrb[0].mxu0
          %762 = vdwg.mxu0
          %v763 = vmax.f32 %v745, 0.0
          %v764 = vmax.f32 %v750, 0.0
          %v765 = vmax.f32 %v755, 0.0
          %v766 = vmax.f32 %v760, 0.0
          %v767 = vand.u32 2147483647, %v745
          %v768 = vand.u32 2147483647, %v750
          %v769 = vand.u32 2147483647, %v755
          %v770 = vand.u32 2147483647, %v760
          %v771 = vsub.f32 0.0, %v767
          %v772 = vsub.f32 0.0, %v768
          %v773 = vsub.f32 0.0, %v769
          %v774 = vsub.f32 0.0, %v770
          %v775 = vmul.f32 %v771, 1.442695
          %v776 = vpow.pop %v775
          %v777 = vmul.f32 %v772, 1.442695
          %v778 = vpow.pop %v777
          %v779 = vmul.f32 %v773, 1.442695
          %v780 = vpow.pop %v779
          %v781 = vmul.f32 %v774, 1.442695
          %v782 = vpow.pop %v781
          %v783 = vadd.f32 %v776, 1.0
          %v784 = vlog2.pop %v783
          %v785 = vmul.f32 %v784, 0.6931472
          %v786 = vmul.f32 -0.5, %v776
          %v787 = vadd.f32 %v786, 1.0
          %v788 = vmul.f32 %v787, %v776
          %v789 = vand.u32 2147483647, %v776
          %vm790 = vcmp.lt.f32.partialorder %v789, 0.0004427343
          %v791 = vsel %vm790, %v788, %v785
          %v792 = vadd.f32 %v778, 1.0
          %v793 = vlog2.pop %v792
          %v794 = vmul.f32 %v793, 0.6931472
          %v795 = vmul.f32 -0.5, %v778
          %v796 = vadd.f32 %v795, 1.0
          %v797 = vmul.f32 %v796, %v778
          %v798 = vand.u32 2147483647, %v778
          %vm799 = vcmp.lt.f32.partialorder %v798, 0.0004427343
          %v800 = vsel %vm799, %v797, %v794
          %v801 = vadd.f32 %v780, 1.0
          %v802 = vlog2.pop %v801
          %v803 = vmul.f32 %v802, 0.6931472
          %v804 = vmul.f32 -0.5, %v780
          %v805 = vadd.f32 %v804, 1.0
          %v806 = vmul.f32 %v805, %v780
          %v807 = vand.u32 2147483647, %v780
          %vm808 = vcmp.lt.f32.partialorder %v807, 0.0004427343
          %v809 = vsel %vm808, %v806, %v803
          %v810 = vadd.f32 %v782, 1.0
          %v811 = vlog2.pop %v810
          %v812 = vmul.f32 %v811, 0.6931472
          %v813 = vmul.f32 -0.5, %v782
          %v814 = vadd.f32 %v813, 1.0
          %v815 = vmul.f32 %v814, %v782
          %v816 = vand.u32 2147483647, %v782
          %vm817 = vcmp.lt.f32.partialorder %v816, 0.0004427343
          %v818 = vsel %vm817, %v815, %v812
          %v819 = vadd.f32 %v763, %v791
          %v820 = vadd.f32 %v764, %v800
          %v821 = vadd.f32 %v765, %v809
          %v822 = vadd.f32 %v766, %v818
          %v823 = vsub.f32 %v819, 0.6931472
          %v824 = vsub.f32 %v820, 0.6931472
          %v825 = vsub.f32 %v821, 0.6931472
          %v826 = vsub.f32 %v822, 0.6931472
          %v827 = vld [vmem:[%s5] sm:$0xff]
          %v828 = vld [vmem:[%s5 + $0x8] sm:$0xff]
          %v829 = vld [vmem:[%s5 + $0x10] sm:$0xff]
          %v830 = vld [vmem:[%s5 + $0x18] sm:$0xff]
          %v831 = vld [vmem:[%s6] sm:$0xff]
          %v832 = vld [vmem:[%s6 + $0x8] sm:$0xff]
          %v833 = vld [vmem:[%s6 + $0x10] sm:$0xff]
          %v834 = vld [vmem:[%s6 + $0x18] sm:$0xff]
          %836 = vset.pattern.permute.xlu0 0
          %837 = vperm.xlu0 %836, %v831
          %v838 = vpop.permute.xlu0 %837
          %841 = vset.pattern.permute.xlu0 0
          %842 = vperm.xlu0 %841, %v832
          %v843 = vpop.permute.xlu0 %842
          %846 = vset.pattern.permute.xlu0 0
          %847 = vperm.xlu0 %846, %v833
          %v848 = vpop.permute.xlu0 %847
          %851 = vset.pattern.permute.xlu0 0
          %852 = vperm.xlu0 %851, %v834
          %v853 = vpop.permute.xlu0 %852
          %v856 = vsel %vm665, %v827, 0
          %v859 = vsel %vm665, %v828, 0
          %v862 = vsel %vm665, %v829, 0
          %v865 = vsel %vm665, %v830, 0
          %867 = vmatprep.subr.mxu0 0.0
          %868 = vmatpush1.msra.mxu0 %v823
          %869 = vmatprep.subr.mxu0 0.0
          %870 = vmatpush1.msra.mxu0 %v824
          %871 = vmatprep.subr.mxu0 0.0
          %872 = vmatpush1.msra.mxu0 %v825
          %873 = vmatprep.subr.mxu0 0.0
          %874 = vmatpush1.msra.mxu0 %v826
          %875 = vmatprep.subr.mxu0 0.0
          %876 = vmatpush1.msra.mxu0 0.0
          %877 = vmatprep.subr.mxu0 0.0
          %878 = vmatpush1.msra.mxu0 0.0
          %879 = vmatprep.subr.mxu0 0.0
          %880 = vmatpush1.msra.mxu0 0.0
          %881 = vmatprep.subr.mxu0 0.0
          %882 = vmatpush1.msra.mxu0 0.0
          %883 = vmatprep.subr.mxu0 0.0
          %884 = vmatpush1.msra.mxu0 0.0
          %885 = vmatprep.subr.mxu0 0.0
          %886 = vmatpush1.msra.mxu0 0.0
          %887 = vmatprep.subr.mxu0 0.0
          %888 = vmatpush1.msra.mxu0 0.0
          %889 = vmatprep.subr.mxu0 0.0
          %890 = vmatpush1.msra.mxu0 0.0
          %891 = vmatprep.subr.mxu0 0.0
          %892 = vmatpush1.msra.mxu0 0.0
          %893 = vmatprep.subr.mxu0 0.0
          %894 = vmatpush1.msra.mxu0 0.0
          %895 = vmatprep.subr.mxu0 0.0
          %896 = vmatpush1.msra.mxu0 0.0
          %897 = vmatprep.subr.mxu0 0.0
          %898 = vmatpush1.msra.mxu0 0.0
          %899 = vmatprep.subr.mxu0 0.0
          %900 = vmatpush1.msra.mxu0 0.0
          %901 = vmatprep.subr.mxu0 0.0
          %902 = vmatpush1.msra.mxu0 0.0
          %903 = vmatprep.subr.mxu0 0.0
          %904 = vmatpush1.msra.mxu0 0.0
          %905 = vmatprep.subr.mxu0 0.0
          %906 = vmatpush1.msra.mxu0 0.0
          %907 = vmatprep.subr.mxu0 0.0
          %908 = vmatpush1.msra.mxu0 0.0
          %909 = vmatprep.subr.mxu0 0.0
          %910 = vmatpush1.msra.mxu0 0.0
          %911 = vmatprep.subr.mxu0 0.0
          %912 = vmatpush1.msra.mxu0 0.0
          %913 = vmatprep.subr.mxu0 0.0
          %914 = vmatpush1.msra.mxu0 0.0
          %915 = vmatprep.subr.mxu0 0.0
          %916 = vmatpush1.msra.mxu0 0.0
          %917 = vmatprep.subr.mxu0 0.0
          %918 = vmatpush1.msra.mxu0 0.0
          %919 = vmatprep.subr.mxu0 0.0
          %920 = vmatpush1.msra.mxu0 0.0
          %921 = vmatprep.subr.mxu0 0.0
          %922 = vmatpush1.msra.mxu0 0.0
          %923 = vmatprep.subr.mxu0 0.0
          %924 = vmatpush1.msra.mxu0 0.0
          %925 = vmatprep.subr.mxu0 0.0
          %926 = vmatpush1.msra.mxu0 0.0
          %927 = vmatprep.subr.mxu0 0.0
          %928 = vmatpush1.msra.mxu0 0.0
          %929 = vmatprep.subr.mxu0 0.0
          %930 = vmatpush1.msra.mxu0 0.0
          %931 = vmatprep.mubr.f32.mxu0 0.0
          %932 = vmatmul.mubr.f32.gmra.mrb[0].mxu0 %v856
          %v933 = vpop.f32.mrb[0].mxu0
          %v934 = vadd.f32 %v838, %v933
          %v935 = vpop.f32.mrb[0].mxu0
          %936 = vmatprep.mubr.f32.mxu0 0.0
          %937 = vmatmul.mubr.f32.gmra.mrb[0].mxu0 %v859
          %v938 = vpop.f32.mrb[0].mxu0
          %v939 = vadd.f32 %v843, %v938
          %v940 = vpop.f32.mrb[0].mxu0
          %941 = vmatprep.mubr.f32.mxu0 0.0
          %942 = vmatmul.mubr.f32.gmra.mrb[0].mxu0 %v862
          %v943 = vpop.f32.mrb[0].mxu0
          %v944 = vadd.f32 %v848, %v943
          %v945 = vpop.f32.mrb[0].mxu0
          %946 = vmatprep.mubr.f32.mxu0 0.0
          %947 = vmatmul.mubr.f32.gmra.mrb[0].mxu0 %v865
          %v948 = vpop.f32.mrb[0].mxu0
          %v949 = vadd.f32 %v853, %v948
          %v950 = vpop.f32.mrb[0].mxu0
          %951 = vdwg.mxu0
          %v952 = vld [vmem:[%s350] sm:$0xff]
          %v953 = vld [vmem:[%s350 + $0x8] sm:$0xff]
          %v954 = vld [vmem:[%s350 + $0x10] sm:$0xff]
          %v955 = vld [vmem:[%s350 + $0x18] sm:$0xff]
          %v956 = vadd.f32 %v952, %v934
          %v957 = vadd.f32 %v953, %v939
          %v958 = vadd.f32 %v954, %v944
          %v959 = vadd.f32 %v955, %v949
          %960 = vst [vmem:[%s396] sm:$0xff] %v956
          %961 = vst [vmem:[%s396 + $0x8] sm:$0xff] %v957
          %962 = vst [vmem:[%s396 + $0x10] sm:$0xff] %v958
          %963 = vst [vmem:[%s396 + $0x18] sm:$0xff] %v959
        $region101: #{tpu_custom_call.1} parent=84 // pred_fallthru
          _
        %s964 = sand.u32 %s206, 1
        %s965 = scalar_lea.sflag [#allocation5], %s964
        %s966 = sand.u32 %s206, 1
        %s967 = smul.addr %s966, 32
        %s968 = scalar_lea.vmem [#allocation7], %s967
        // Predicated region
        $region102: #{tpu_custom_call.1} parent=84 // pred_check
          %p969 = pneg %p216
        $region103: #{tpu_custom_call.1} parent=84 // pred_check_branch
          %971 = sbr.rel (%p969) target = $region105
        $region104: #{tpu_custom_call.1} parent=84 // pred_region
          %s973 = ssub.s32 512, 512
          %974 = vsyncadd %s965, %s973
          %s975 = smul.addr %s28, 128
          %s976 = scalar_lea.hbm %s7, %s975
          %s977 = sshll.u32 %s968, 4
          %s978 = int_to_ptr.vmem [resolvable:$true] %s977
          %983 = dma.vmem_to_hbm [thread:$0]  %s978, 512, %s976, %s965, 128, 256, 8
        $region105: #{tpu_custom_call.1} parent=84 // pred_fallthru
          _
      $region85: #{tpu_custom_call.1} parent=5 // pred_fallthru
        _
      %p984 = scmp.le.s32.totalorder 2, %s19
      // Predicated region
      $region106: #{tpu_custom_call.1} parent=5 // pred_check
        %p985 = pneg %p984
      $region107: #{tpu_custom_call.1} parent=5 // pred_check_branch
        %987 = sbr.rel (%p985) target = $region109
      $region108: #{tpu_custom_call.1} parent=5 // pred_region
        %s988 = ssub.s32 %s19, 2
        // Predicated region
        $region110: #{tpu_custom_call.1} parent=108 // pred_check
          %p989 = pneg %p222
        $region111: #{tpu_custom_call.1} parent=108 // pred_check_branch
          %991 = sbr.rel (%p989) target = $region113
        $region112: #{tpu_custom_call.1} parent=108 // pred_region
          %s992 = sand.u32 %s207, 1
          %s993 = scalar_lea.sflag [#allocation5], %s992
          %s994 = sand.u32 %s207, 1
          %s995 = smul.addr %s994, 32
          %s996 = scalar_lea.vmem [#allocation7], %s995
          %997 = dma.done %s993, 512
        $region113: #{tpu_custom_call.1} parent=108 // pred_fallthru
          _
      $region109: #{tpu_custom_call.1} parent=5 // pred_fallthru
        _
    $region6: #{tpu_custom_call.1} parent=1 // loop_footer
      %s23 = sadd.s32 1, %s19
    $region7: #{tpu_custom_call.1} parent=1 // loop_footer_branch
      %18 = sbr.rel target = $region3
    $region8: #{tpu_custom_call.1} parent=1 // loop_exit
      _
    %998 = vsyncpa [#allocation4], 1
    %s999 = scalar_lea.sflag [#allocation4], 1
    %1000 = vsyncpa %s999, 1
    %1001 = vsyncpa [#allocation5], 1
    %s1002 = scalar_lea.sflag [#allocation5], 1
    %1003 = vsyncpa %s1002, 1

</llo_original>
